<compile_context>
chip_gen: v5e
topology: v5e:2x2
jax: 0.10.0
libtpu: 0.0.40
codegen_flags: <defaults>
</compile_context>

<pallas_src>
import functools
import math

import jax
import jax.numpy as jnp
from jax import lax
from jax.experimental import pallas as pl
from jax.experimental.pallas import tpu as pltpu


def _byol_partial_kernel(x_ref, out_ref, *, batch_size, tile_b, d):
    # x_ref:  (tb, block_cols) tile in the source dtype; views 0 and 1 occupy
    #         columns [0, d) and [d, 2d).
    # out_ref:(1, 1, d) fp32 lane-dense slab of per-column partial sums.
    i = pl.program_id(0)

    if d % 128 == 0:
        # Lane-aligned ref slices: load only the two views' columns from VMEM.
        f1 = x_ref[:, :d].astype(jnp.float32)
        f2 = x_ref[:, d:2 * d].astype(jnp.float32)
    else:
        # Small / odd D: load the tile and slice the value (always supported).
        x = x_ref[...]
        f1 = x[:, :d].astype(jnp.float32)
        f2 = x[:, d:2 * d].astype(jnp.float32)

    prod = f1 * f2  # (tb, d) fp32, pure VPU

    if batch_size % tile_b != 0:
        # Ragged tail: rows past batch_size carry undefined data.  Only the
        # last grid step pays for the mask (cheap (tb,1) iota + broadcast).
        def _mask(p):
            row = i * tile_b + lax.broadcasted_iota(jnp.int32, (tile_b, 1), 0)
            return jnp.where(row < batch_size, p, 0.0)

        prod = lax.cond(i == pl.num_programs(0) - 1, _mask, lambda p: p, prod)

    # Column partial sums: reduce over the batch-row axis only -> mostly vreg
    # adds, no scalar broadcast, output stays lane-dense.  (A full (8,128)
    # lane-fold would need a layout-changing reshape, so it is intentionally
    # not done; this kernel is HBM-bound and the reduce hides under DMA.)
    out_ref[...] = prod.sum(axis=0, keepdims=True)[None]


def byol_loss(cl_features: jax.Array, *, max_tile_rows: int | None = None) -> jax.Array:
    """Pallas-backed BYOL loss. Mirrors BYOLLoss.forward exactly."""
    if cl_features.ndim < 3:
        raise ValueError(
            "`features` needs to be [bsz, n_views, ...],"
            "at least 3 dimensions are required"
        )
    B, V = cl_features.shape[0], cl_features.shape[1]
    if V < 2:
        raise ValueError("BYOL loss needs at least two views")
    D = math.prod(cl_features.shape[2:])

    # Free, contiguous reshape: view v occupies columns [v*D, (v+1)*D).
    x = cl_features.reshape(B, V * D)
    itemsize = x.dtype.itemsize

    # Columns fetched per row: just the first two views when that slice is
    # 128-lane aligned (or V == 2, where 2*D is the full row); otherwise fall
    # back to full rows (extra columns are DMA'd but never touched).
    if V == 2 or (2 * D) % 128 == 0:
        block_cols = 2 * D
    else:
        block_cols = V * D

    # --- Tile sizing with honest VMEM accounting -----------------------------
    # Resident bytes per batch row:
    #   2 * row_bytes             double-buffered input tile
    #   3 * D * 4                 fp32 temporaries f1, f2, prod
    #   row_bytes                 possible staged value copy (value-slice path)
    row_bytes = block_cols * itemsize
    resident_per_row = 3 * row_bytes + 12 * D
    vmem_budget = 40 << 20                 # total budget (fits v7x 64 MiB phys)
    per_buffer_target = 8 << 20            # >= ~8 MiB/buffer amortizes the
                                           # ~0.35 us per-step overhead at 3.2 TB/s
    tb = min(max(1, vmem_budget // resident_per_row),
             max(1, per_buffer_target // row_bytes))
    if max_tile_rows is not None:
        tb = min(tb, max_tile_rows)
    if tb >= B:
        tb = B                              # single tile; full-dim block is legal
    else:
        # Align rows to the dtype's sublane packing (8 f32 / 16 bf16 / 32 int8).
        align = max(8, 32 // itemsize)
        tb = max(align, (tb // align) * align)
        tb = min(tb, B)
    nb = -(-B // tb)                        # ceil-div; ragged tail masked in-kernel

    tile_bytes = tb * row_bytes
    vmem_limit = resident_per_row * tb + (8 << 20)
    vmem_limit = min(max(vmem_limit, 32 << 20), 48 << 20)

    kernel = functools.partial(_byol_partial_kernel, batch_size=B, tile_b=tb, d=D)

    partials = pl.pallas_call(
        kernel,
        out_shape=jax.ShapeDtypeStruct((nb, 1, D), jnp.float32),
        grid=(nb,),
        in_specs=[pl.BlockSpec((tb, block_cols), lambda i: (i, 0))],
        out_specs=pl.BlockSpec((1, 1, D), lambda i: (i, 0, 0)),
        compiler_params=pltpu.CompilerParams(
            # Independent per-block partials -> safe to shard across TCs (v7x).
            dimension_semantics=("parallel",),
            vmem_limit_bytes=int(vmem_limit),
        ),
        cost_estimate=pl.CostEstimate(
            flops=2 * B * D,
            transcendentals=0,
            bytes_accessed=B * block_cols * itemsize + nb * D * 4,
        ),
    )(x)

    # Dense contiguous reduce over all partials, then the scalar affine:
    #   loss = mean_b(2 - 2*dot_b) = 2 - (2/B) * sum_b(dot_b)
    total = jnp.sum(partials)
    return (2.0 - (2.0 / B) * total).astype(jnp.float32)
    # TODO(synk): the PyTorch module's non-finite debug print is host-side
    # diagnostics only and is intentionally not reproduced in-kernel.


if __name__ == "__main__":
    key = jax.random.PRNGKey(0)
    # [bsz=2, n_views=2, C=4, spatial=16] -> flattened inside to [2, 2, 64]
    x = jax.random.normal(key, (2, 2, 4, 16), dtype=jnp.float32)
    # L2-normalize each view's feature vector (typical BYOL input), purely to
    # make values well-conditioned; the loss math is independent of this.
    x_flat = x.reshape(2, 2, -1)
    x_flat = x_flat / jnp.linalg.norm(x_flat, axis=-1, keepdims=True)
    x = x_flat.reshape(2, 2, 4, 16)

    loss = byol_loss(x)
    jax.block_until_ready(loss)

    # Plain-JAX reference check (same formula as the PyTorch module).
    f = x.reshape(2, 2, -1)
    ref = jnp.mean(2.0 - 2.0 * jnp.sum(f[:, 0] * f[:, 1], axis=-1))
    assert math.isfinite(float(loss))
    assert abs(float(loss) - float(ref)) < 1e-5, (float(loss), float(ref))

    # bf16, odd batch -> single full-batch tile, value-fallback reduce path.
    xb = jax.random.normal(jax.random.PRNGKey(1), (37, 2, 256), jnp.bfloat16)
    loss_b = byol_loss(xb)
    jax.block_until_ready(loss_b)
    fb = xb.astype(jnp.float32)
    ref_b = jnp.mean(2.0 - 2.0 * jnp.sum(fb[:, 0] * fb[:, 1], axis=-1))
    assert abs(float(loss_b) - float(ref_b)) < 1e-3, (float(loss_b), float(ref_b))

    # f32, forced small tile -> exercises multi-tile grid + gated ragged mask.
    xc = jax.random.normal(jax.random.PRNGKey(2), (40, 2, 256), jnp.float32)
    loss_c = byol_loss(xc, max_tile_rows=16)
    jax.block_until_ready(loss_c)
    ref_c = jnp.mean(2.0 - 2.0 * jnp.sum(xc[:, 0] * xc[:, 1], axis=-1))
    assert abs(float(loss_c) - float(ref_c)) < 5e-4, (float(loss_c), float(ref_c))

    print("KERNEL_OK")
</pallas_src>

<mosaic_0001>
module attributes {stable_mosaic.version = 11 : i64} {
  func.func @_byol_partial_kernel(%arg0: i32, %arg1: memref<2x128xf32, #tpu.memory_space<vmem>>, %arg2: memref<1x1x64xf32, #tpu.memory_space<vmem>>) attributes {dimension_semantics = [#tpu.dimension_semantics<parallel>], iteration_bounds = array<i64: 1>, scalar_prefetch = 0 : i64, scratch_operands = 0 : i64, tpu.core_type = #tpu.core_type<tc>, window_params = [{transform_indices = @transform_0, window_bounds = array<i64: 2, 128>}, {transform_indices = @transform_1, window_bounds = array<i64: 1, 1, 64>}]} {
    %c0 = arith.constant 0 : index
    %c0_0 = arith.constant 0 : index
    %0 = vector.load %arg1[%c0, %c0_0] : memref<2x128xf32, #tpu.memory_space<vmem>>, vector<2x128xf32>
    %1 = vector.extract_strided_slice %0 {offsets = [0, 0], sizes = [2, 64], strides = [1, 1]} : vector<2x128xf32> to vector<2x64xf32>
    %2 = vector.extract_strided_slice %0 {offsets = [0, 64], sizes = [2, 64], strides = [1, 1]} : vector<2x128xf32> to vector<2x64xf32>
    %3 = arith.mulf %1, %2 : vector<2x64xf32>
    %cst = arith.constant dense<0.000000e+00> : vector<64xf32>
    %4 = vector.multi_reduction <add>, %3, %cst [0] : vector<2x64xf32> to vector<64xf32>
    %5 = vector.shape_cast %4 : vector<64xf32> to vector<1x64xf32>
    %6 = vector.shape_cast %5 : vector<1x64xf32> to vector<1x1x64xf32>
    %c0_1 = arith.constant 0 : index
    %c0_2 = arith.constant 0 : index
    %c0_3 = arith.constant 0 : index
    %7 = vector.load %arg2[%c0_1, %c0_2, %c0_3] : memref<1x1x64xf32, #tpu.memory_space<vmem>>, vector<1x1x64xf32>
    tpu.vector_store %arg2[%c0_1, %c0_2, %c0_3], %6 {strides = array<i32>} : memref<1x1x64xf32, #tpu.memory_space<vmem>>, vector<1x1x64xf32>,
    return
  }
  func.func @transform_0(%arg0: i32) -> (i32, i32) {
    %c0_i32 = arith.constant 0 : i32
    %c0_i32_0 = arith.constant 0 : i32
    return %arg0, %c0_i32 : i32, i32
  }
  func.func @transform_1(%arg0: i32) -> (i32, i32, i32) {
    %c0_i32 = arith.constant 0 : i32
    %c0_i32_0 = arith.constant 0 : i32
    %c0_i32_1 = arith.constant 0 : i32
    return %arg0, %c0_i32, %c0_i32_0 : i32, i32, i32
  }
}

</mosaic_0001>

<llo_original>
// kernel: tpu_custom_call.1
$region0: #{tpu_custom_call.1}
  #allocation0 [shape = 'u32[]', space=smem, size = 0x4, offset = 0x4, fixed_abs, tag = 'smem constant byte address 0x4 - core index']
  #allocation1 [shape = 'u32[72,128]{1,0:T(1,128)}', space=vmem, size = 0x9000, scoped, tag = 'internal scratch']
  %s0 = inlined_call_operand.hbm [shape: f32[2,128], index: 0, kind: input, shape index: {}]
  %s1 = inlined_call_operand.hbm [shape: f32[1,1,64], index: 1, kind: output, shape index: {}]
  %s2 = sld [smem:[#allocation0]]
  $region18: #{tpu_custom_call.1} parent=0
    _
  %s4 = ssub.s32 1, %s2
  %s5 = scalar_select 0, %s4, %s2
  $region1: #{tpu_custom_call.1} parent=0
    #allocation2 [shape = 'u8[1024]{0}', space=vmem, size = 0x400, scoped, tag = 'input window, operand 0, single buffered']
    #allocation3 [shape = 's32[1]{0}', space=sflag, size = 0x4, scoped, tag = 'scoped memory for tpu_custom_call.1']
    #allocation4 [shape = 's32[1]{0}', space=sflag, size = 0x4, scoped, tag = 'scoped memory for tpu_custom_call.1']
    #allocation5 [shape = 'u8[512]{0}', space=vmem, size = 0x400, scoped, tag = 'output window, operand 0, single buffered']
    %6 = vsyncpa [#allocation3], 0
    %7 = vsyncpa [#allocation4], 0
    // Predicated region
    $region2: #{tpu_custom_call.1} parent=1 // pred_check
      _
    $region3: #{tpu_custom_call.1} parent=1 // pred_check_branch
      %9 = sbr.rel (0) target = $region5
    $region4: #{tpu_custom_call.1} parent=1 // pred_region
      %11 = vsyncadd [#allocation3], 0
      %s13 = sshll.u32 %s0, 4
      %s14 = int_to_ptr.hbm [resolvable:$true] %s13
      %s15 = sshll.u32 [#allocation2], 4
      %s16 = int_to_ptr.vmem [resolvable:$true] %s15
      %18 = dma.hbm_to_vmem [thread:$0]  %s14, 32, %s16, [#allocation3]
    $region5: #{tpu_custom_call.1} parent=1 // pred_fallthru
      _
    // Predicated region
    $region6: #{tpu_custom_call.1} parent=1 // pred_check
      _
    $region7: #{tpu_custom_call.1} parent=1 // pred_check_branch
      %20 = sbr.rel (0) target = $region9
    $region8: #{tpu_custom_call.1} parent=1 // pred_region
      %22 = dma.done [#allocation3], 32
    $region9: #{tpu_custom_call.1} parent=1 // pred_fallthru
      _
    %v23 = vld [vmem:[#allocation2] sm:$0x3]
    %25 = vrot.lane.b32.xlu0 %v23, 64
    %v26 = vpop.permute.xlu0 %25
    %v28 = vmul.f32 %v23, %v26
    %vm29 = vcmask 517120
    %v30 = vsel %vm29, %v28, 0.0
    %v31 = vrot.slane %v30, 4
    %v32 = vadd.f32 %v30, %v31
    %v33 = vrot.slane %v32, 2
    %v34 = vadd.f32 %v32, %v33
    %v35 = vrot.slane %v34, 1
    %v36 = vadd.f32 %v34, %v35
    %vm37 = vcmask 516096
    %38 = vst.msk [vmem:[#allocation5] sm:$0x1] %vm37, %v36
    // Predicated region
    $region10: #{tpu_custom_call.1} parent=1 // pred_check
      _
    $region11: #{tpu_custom_call.1} parent=1 // pred_check_branch
      %40 = sbr.rel (0) target = $region13
    $region12: #{tpu_custom_call.1} parent=1 // pred_region
      %42 = vsyncadd [#allocation4], 0
      %s44 = sshll.u32 [#allocation5], 4
      %s45 = int_to_ptr.vmem [resolvable:$true] %s44
      %s46 = sshll.u32 %s1, 4
      %s47 = int_to_ptr.hbm [resolvable:$true] %s46
      %49 = dma.vmem_to_hbm [thread:$0]  %s45, 16, %s47, [#allocation4]
    $region13: #{tpu_custom_call.1} parent=1 // pred_fallthru
      _
    // Predicated region
    $region14: #{tpu_custom_call.1} parent=1 // pred_check
      _
    $region15: #{tpu_custom_call.1} parent=1 // pred_check_branch
      %51 = sbr.rel (0) target = $region17
    $region16: #{tpu_custom_call.1} parent=1 // pred_region
      %53 = dma.done [#allocation4], 16
    $region17: #{tpu_custom_call.1} parent=1 // pred_fallthru
      _
    %54 = vsyncpa [#allocation3], 1
    %55 = vsyncpa [#allocation4], 1

</llo_original>
